<compile_context>
chip_gen: v7x
topology: tpu7x:2x2x1
jax: 0.10.0
libtpu: 0.0.40
codegen_flags: <defaults>
</compile_context>

<pallas_src>
import jax
import jax.numpy as jnp
from jax.experimental import pallas as pl
from jax.experimental.pallas import tpu as pltpu

# ---- model dimensions (small, consistent with the module) ----
B = 2                   # batch
S = 8                   # sequence length (power of two; mask uses & (S-1))
VOCAB = 50              # vocab_size
VPAD = 64               # vocab padded for the one-hot gather matmul
E = 32                  # embedding_size
FILTERS = (3, 4, 5)     # args.filters
F_NUM = 16              # args.filter_num[-1]
CF = len(FILTERS) * F_NUM   # 48 packed conv channels
HID = 32                # args.hidden_dim[0]
NUM_CLASS = 2           # args.num_class
HL = HID + NUM_CLASS    # 34 = packed [hidden | logit] width
KMAX = max(FILTERS)     # 5 fused causal taps
BS = B * S              # batch flattened onto sublanes

# ---- packed bf16 weight-slab layout (row offsets multiples of 16) ----
W_LANES = 128
R_T = 0                       # folded gather table (emb @ W_emb^T), (VPAD, E)
R_WC = R_T + VPAD             # 64  : fused conv tap slab, (KMAX*E, CF)
R_WP = R_WC + KMAX * E        # 224 : folded fc|head slab, (CF, HL)
R_B = R_WP + CF               # 272 : packed bias row, (1, 128)
W_ROWS = R_B + 16             # 288

# bias-row lane offsets
B_EMB = 0
B_CONV = E                    # 32
B_PACK = E + CF               # 80

# ---- output slab ----
OUT_ROWS = 8                  # sublane-tile padded (rows [B:] are zero)
OUT_LANES = 128               # lanes [0,HID)=hidden, [HID,HID+NUM_CLASS)=logit


def encoder_kernel(data_ref, w_ref, out_ref):
    # ---- unpack the weight slab (static, lane-0-anchored, tile-aligned rows) ----
    tbl = w_ref[R_T:R_T + VPAD, 0:E]                       # (64, 32)  bf16
    wc = w_ref[R_WC:R_WC + KMAX * E, 0:CF]                 # (160, 48) bf16
    wp = w_ref[R_WP:R_WP + CF, 0:HL]                       # (48, 34)  bf16
    b_all = w_ref[R_B:R_B + 1, :].astype(jnp.float32)      # (1, 128)  f32
    b_emb = b_all[:, B_EMB:B_EMB + E]
    b_conv = b_all[:, B_CONV:B_CONV + CF]
    b_pack = b_all[:, B_PACK:B_PACK + HL]

    # ---- data slab: lane 0 = word index (as f32), lane 1 = rationale mask ----
    d = data_ref[...]                                      # (BS, 2) f32
    idx = d[:, 0:1].astype(jnp.int32)                      # (BS, 1)
    msk = d[:, 1:2]                                        # (BS, 1) f32

    # ---- embedding gather fused with embedding_fc: one-hot matmul on the MXU ----
    vocab_iota = jax.lax.broadcasted_iota(jnp.int32, (BS, VPAD), 1)
    onehot = (vocab_iota == idx).astype(jnp.bfloat16)      # exact {0,1}
    h = jnp.dot(onehot, tbl, preferred_element_type=jnp.float32)   # (BS, E) f32
    # mask is a per-row scalar -> commutes through the folded W_emb matmul
    h = jnp.maximum(h * msk + b_emb, 0.0)                  # ReLU; dropout = identity (eval)

    # ---- fused causal convs (widths 3/4/5) as ONE matmul over K = KMAX*E ----
    # time index of each flattened row within its own sequence (S is a power of two)
    tcol = jax.lax.broadcasted_iota(jnp.int32, (BS, 1), 0) & (S - 1)
    taps = [h]
    for s in range(1, KMAX):                               # static unroll, XLU sublane rolls
        hs = pltpu.roll(h, shift=s, axis=0)                # row i <- h[i - s] (wraps)
        taps.append(jnp.where(tcol >= s, hs, 0.0))         # kill wraparound + cross-seq bleed
    x_taps = jnp.concatenate(taps, axis=-1).astype(jnp.bfloat16)   # (BS, 160) bf16
    act = jnp.maximum(
        jnp.dot(x_taps, wc, preferred_element_type=jnp.float32) + b_conv, 0.0)  # (BS, CF)

    # ---- max-pool over time (S == 8 matches the f32 sublane tile -> free reshape) ----
    pooled = jnp.max(act.reshape(B, S, CF), axis=1)        # (B, CF)

    # ---- fc + class head folded: one dot emits [hidden | logit] lane-packed ----
    hl = jnp.dot(pooled.astype(jnp.bfloat16), wp,
                 preferred_element_type=jnp.float32) + b_pack        # (B, HL) f32

    # ---- single full (8, 128) store ----
    out = jnp.concatenate(
        [hl, jnp.zeros((B, OUT_LANES - HL), jnp.float32)], axis=-1)
    out = jnp.concatenate(
        [out, jnp.zeros((OUT_ROWS - B, OUT_LANES), jnp.float32)], axis=0)
    out_ref[...] = out


def init_raw_params(key):
    """Parameters in PyTorch layouts (Linear: (out,in); Conv1d: (F, E, k))."""
    ks = jax.random.split(key, 12)
    n = lambda k, shp: 0.1 * jax.random.normal(k, shp, jnp.float32)
    raw = {
        'embedding': n(ks[0], (VOCAB, E)),
        'w_emb': n(ks[1], (E, E)), 'b_emb': n(ks[2], (E,)),
        'conv3_w': n(ks[3], (F_NUM, E, 3)), 'conv3_b': n(ks[4], (F_NUM,)),
        'conv4_w': n(ks[5], (F_NUM, E, 4)), 'conv4_b': n(ks[6], (F_NUM,)),
        'conv5_w': n(ks[7], (F_NUM, E, 5)), 'conv5_b': n(ks[8], (F_NUM,)),
        'w_fc': n(ks[9], (HID, CF)), 'b_fc': 0.1 * jnp.ones((HID,), jnp.float32),
        'w_out': n(ks[10], (NUM_CLASS, HID)), 'b_out': n(ks[11], (NUM_CLASS,)),
    }
    return raw


def kernel_params(raw):
    """Pack all weights into ONE bf16 slab (folding done in f32 host-side)."""
    # folded gather table: embedding @ W_emb^T, vocab-padded to 64 rows
    tbl = jnp.zeros((VPAD, E), jnp.float32).at[:VOCAB].set(
        raw['embedding'] @ raw['w_emb'].T)

    # fused causal-conv tap slab: row s*E+e, col fi*F_NUM+f = conv_w[f, e, k-1-s]
    wc = jnp.zeros((KMAX, E, CF), jnp.float32)
    for fi, k in enumerate(FILTERS):
        w = raw[f'conv{k}_w']                               # (F_NUM, E, k)
        for s in range(k):
            wc = wc.at[s, :, fi * F_NUM:(fi + 1) * F_NUM].set(w[:, :, k - 1 - s].T)
    wc = wc.reshape(KMAX * E, CF)

    # folded fc + class head (no nonlinearity between them in the module)
    wp = jnp.concatenate([raw['w_fc'].T, raw['w_fc'].T @ raw['w_out'].T], axis=1)  # (CF, HL)
    b_pack = jnp.concatenate([raw['b_fc'],
                              raw['b_fc'] @ raw['w_out'].T + raw['b_out']])        # (HL,)

    # packed bias row: b_emb | conv biases (3|4|5) | [b_fc | folded head bias]
    brow = jnp.zeros((1, W_LANES), jnp.float32)
    brow = brow.at[0, B_EMB:B_EMB + E].set(raw['b_emb'])
    brow = brow.at[0, B_CONV:B_CONV + F_NUM].set(raw['conv3_b'])
    brow = brow.at[0, B_CONV + F_NUM:B_CONV + 2 * F_NUM].set(raw['conv4_b'])
    brow = brow.at[0, B_CONV + 2 * F_NUM:B_CONV + 3 * F_NUM].set(raw['conv5_b'])
    brow = brow.at[0, B_PACK:B_PACK + HL].set(b_pack)

    slab = jnp.zeros((W_ROWS, W_LANES), jnp.float32)
    slab = slab.at[R_T:R_T + VPAD, :E].set(tbl)
    slab = slab.at[R_WC:R_WC + KMAX * E, :CF].set(wc)
    slab = slab.at[R_WP:R_WP + CF, :HL].set(wp)
    slab = slab.at[R_B:R_B + 1, :].set(brow)
    return slab.astype(jnp.bfloat16)


@jax.jit
def encoder_forward(x_indx, mask, wslab):
    # flatten batch onto sublanes; pack idx (exact as f32) + mask into one slab
    idx = x_indx[:, 0, :].reshape(BS, 1).astype(jnp.float32)
    m = mask.reshape(BS, 1).astype(jnp.float32)
    data = jnp.concatenate([idx, m], axis=-1)               # (BS, 2) f32

    vmem = pl.BlockSpec(memory_space=pltpu.MemorySpace.VMEM)
    out = pl.pallas_call(
        encoder_kernel,
        out_shape=jax.ShapeDtypeStruct((OUT_ROWS, OUT_LANES), jnp.float32),
        in_specs=[vmem, vmem],
        out_specs=vmem,
    )(data, wslab)

    hidden = out[:B, :HID]
    logit = out[:B, HID:HID + NUM_CLASS]
    return logit, hidden


def reference_forward(x_indx, mask, raw):
    """Plain-JAX f32 mirror of the PyTorch forward (eval mode)."""
    x = raw['embedding'][x_indx[:, 0, :]]
    x = x * mask[..., None]
    x = jax.nn.relu(x @ raw['w_emb'].T + raw['b_emb'])       # embedding_fc
    xc = jnp.transpose(x, (0, 2, 1))                          # NCL like torch
    feats = []
    for k in FILTERS:
        w, b = raw[f'conv{k}_w'], raw[f'conv{k}_b']
        y = jax.lax.conv_general_dilated(
            xc, w, window_strides=(1,), padding=[(k - 1, 0)],
            dimension_numbers=('NCH', 'OIH', 'NCH'))
        feats.append(y + b[None, :, None])
    act = jax.nn.relu(jnp.concatenate(feats, axis=1))        # (B, 3F, S)
    pooled = jnp.max(act, axis=2)
    hidden = pooled @ raw['w_fc'].T + raw['b_fc']
    logit = hidden @ raw['w_out'].T + raw['b_out']
    return logit, hidden


if __name__ == "__main__":
    key = jax.random.PRNGKey(0)
    k_param, k_idx = jax.random.split(key)

    raw = init_raw_params(k_param)
    wslab = kernel_params(raw)

    x_indx = jax.random.randint(k_idx, (B, 1, S), 0, VOCAB, dtype=jnp.int32)
    # deterministic rationale mask: batch 0 keeps all 8 tokens, batch 1 keeps 6
    mask = (jnp.arange(S)[None, :] < jnp.array([[S], [S - 2]])).astype(jnp.float32)

    logit, hidden = encoder_forward(x_indx, mask, wslab)
    jax.block_until_ready((logit, hidden))

    ref_logit, ref_hidden = reference_forward(x_indx, mask, raw)
    assert logit.shape == (B, NUM_CLASS) and hidden.shape == (B, HID)
    assert jnp.allclose(logit, ref_logit, rtol=2e-2, atol=2e-2)
    assert jnp.allclose(hidden, ref_hidden, rtol=2e-2, atol=2e-2)

    print("KERNEL_OK")
</pallas_src>

<mosaic_0001>
module attributes {stable_mosaic.version = 11 : i64} {
  func.func @encoder_kernel(%arg0: memref<16x2xf32, #tpu.memory_space<vmem>>, %arg1: memref<288x128xbf16, #tpu.memory_space<vmem>>, %arg2: memref<8x128xf32, #tpu.memory_space<vmem>>) attributes {dimension_semantics = [], scalar_prefetch = 0 : i64, scratch_operands = 0 : i64, tpu.core_type = #tpu.core_type<tc>} {
    %c0 = arith.constant 0 : index
    %c0_0 = arith.constant 0 : index
    %0 = vector.load %arg1[%c0, %c0_0] : memref<288x128xbf16, #tpu.memory_space<vmem>>, vector<64x32xbf16>
    %c64 = arith.constant 64 : index
    %c0_1 = arith.constant 0 : index
    %1 = vector.load %arg1[%c64, %c0_1] : memref<288x128xbf16, #tpu.memory_space<vmem>>, vector<160x48xbf16>
    %c224 = arith.constant 224 : index
    %c0_2 = arith.constant 0 : index
    %2 = vector.load %arg1[%c224, %c0_2] : memref<288x128xbf16, #tpu.memory_space<vmem>>, vector<48x34xbf16>
    %c272 = arith.constant 272 : index
    %c0_3 = arith.constant 0 : index
    %3 = vector.load %arg1[%c272, %c0_3] : memref<288x128xbf16, #tpu.memory_space<vmem>>, vector<1x128xbf16>
    %4 = arith.extf %3 : vector<1x128xbf16> to vector<1x128xf32>
    %5 = vector.extract_strided_slice %4 {offsets = [0, 0], sizes = [1, 32], strides = [1, 1]} : vector<1x128xf32> to vector<1x32xf32>
    %6 = vector.extract_strided_slice %4 {offsets = [0, 32], sizes = [1, 48], strides = [1, 1]} : vector<1x128xf32> to vector<1x48xf32>
    %7 = vector.extract_strided_slice %4 {offsets = [0, 80], sizes = [1, 34], strides = [1, 1]} : vector<1x128xf32> to vector<1x34xf32>
    %c0_4 = arith.constant 0 : index
    %c0_5 = arith.constant 0 : index
    %8 = vector.load %arg0[%c0_4, %c0_5] : memref<16x2xf32, #tpu.memory_space<vmem>>, vector<16x2xf32>
    %9 = vector.extract_strided_slice %8 {offsets = [0, 0], sizes = [16, 1], strides = [1, 1]} : vector<16x2xf32> to vector<16x1xf32>
    %10 = arith.fptosi %9 : vector<16x1xf32> to vector<16x1xi32>
    %11 = vector.extract_strided_slice %8 {offsets = [0, 1], sizes = [16, 1], strides = [1, 1]} : vector<16x2xf32> to vector<16x1xf32>
    %12 = tpu.iota {dimensions = array<i32: 1>} : vector<16x64xi32>
    %13 = vector.broadcast %10 : vector<16x1xi32> to vector<16x64xi32>
    %14 = arith.cmpi eq, %12, %13 : vector<16x64xi32>
    %15 = arith.extui %14 : vector<16x64xi1> to vector<16x64xi32>
    %16 = arith.sitofp %15 : vector<16x64xi32> to vector<16x64xf32>
    %17 = arith.truncf %16 : vector<16x64xf32> to vector<16x64xbf16>
    %cst = arith.constant dense<0.000000e+00> : vector<16x32xf32>
    %18 = tpu.matmul %17, %0, %cst {dimension_numbers = #tpu.dot_dimension_numbers<[1], [0], [0], [1], [0, 0, 1, 1], [], []>} : vector<16x64xbf16>, vector<64x32xbf16>, vector<16x32xf32> -> vector<16x32xf32>
    %19 = vector.broadcast %11 : vector<16x1xf32> to vector<16x32xf32>
    %20 = arith.mulf %18, %19 : vector<16x32xf32>
    %21 = vector.broadcast %5 : vector<1x32xf32> to vector<16x32xf32>
    %22 = arith.addf %20, %21 : vector<16x32xf32>
    %cst_6 = arith.constant 0.000000e+00 : f32
    %23 = vector.broadcast %cst_6 : f32 to vector<16x32xf32>
    %24 = arith.maximumf %22, %23 : vector<16x32xf32>
    %25 = tpu.iota {dimensions = array<i32: 0>} : vector<16x1xi32>
    %c7_i32 = arith.constant 7 : i32
    %26 = vector.broadcast %c7_i32 : i32 to vector<16x1xi32>
    %27 = arith.andi %25, %26 : vector<16x1xi32>
    %c1_i32 = arith.constant 1 : i32
    %28 = tpu.dynamic_rotate %24 by %c1_i32 dim 0 : vector<16x32xf32>, i32 -> vector<16x32xf32>
    %c1_i32_7 = arith.constant 1 : i32
    %29 = vector.broadcast %c1_i32_7 : i32 to vector<16x1xi32>
    %30 = arith.cmpi sge, %27, %29 : vector<16x1xi32>
    %cst_8 = arith.constant 0.000000e+00 : f32
    %31 = vector.shape_cast %30 : vector<16x1xi1> to vector<16x1xi1>
    %32 = vector.broadcast %31 : vector<16x1xi1> to vector<16x32xi1>
    %33 = vector.broadcast %cst_8 : f32 to vector<16x32xf32>
    %34 = arith.select %32, %28, %33 : vector<16x32xi1>, vector<16x32xf32>
    %c2_i32 = arith.constant 2 : i32
    %35 = tpu.dynamic_rotate %24 by %c2_i32 dim 0 : vector<16x32xf32>, i32 -> vector<16x32xf32>
    %c2_i32_9 = arith.constant 2 : i32
    %36 = vector.broadcast %c2_i32_9 : i32 to vector<16x1xi32>
    %37 = arith.cmpi sge, %27, %36 : vector<16x1xi32>
    %cst_10 = arith.constant 0.000000e+00 : f32
    %38 = vector.shape_cast %37 : vector<16x1xi1> to vector<16x1xi1>
    %39 = vector.broadcast %38 : vector<16x1xi1> to vector<16x32xi1>
    %40 = vector.broadcast %cst_10 : f32 to vector<16x32xf32>
    %41 = arith.select %39, %35, %40 : vector<16x32xi1>, vector<16x32xf32>
    %c3_i32 = arith.constant 3 : i32
    %42 = tpu.dynamic_rotate %24 by %c3_i32 dim 0 : vector<16x32xf32>, i32 -> vector<16x32xf32>
    %c3_i32_11 = arith.constant 3 : i32
    %43 = vector.broadcast %c3_i32_11 : i32 to vector<16x1xi32>
    %44 = arith.cmpi sge, %27, %43 : vector<16x1xi32>
    %cst_12 = arith.constant 0.000000e+00 : f32
    %45 = vector.shape_cast %44 : vector<16x1xi1> to vector<16x1xi1>
    %46 = vector.broadcast %45 : vector<16x1xi1> to vector<16x32xi1>
    %47 = vector.broadcast %cst_12 : f32 to vector<16x32xf32>
    %48 = arith.select %46, %42, %47 : vector<16x32xi1>, vector<16x32xf32>
    %c4_i32 = arith.constant 4 : i32
    %49 = tpu.dynamic_rotate %24 by %c4_i32 dim 0 : vector<16x32xf32>, i32 -> vector<16x32xf32>
    %c4_i32_13 = arith.constant 4 : i32
    %50 = vector.broadcast %c4_i32_13 : i32 to vector<16x1xi32>
    %51 = arith.cmpi sge, %27, %50 : vector<16x1xi32>
    %cst_14 = arith.constant 0.000000e+00 : f32
    %52 = vector.shape_cast %51 : vector<16x1xi1> to vector<16x1xi1>
    %53 = vector.broadcast %52 : vector<16x1xi1> to vector<16x32xi1>
    %54 = vector.broadcast %cst_14 : f32 to vector<16x32xf32>
    %55 = arith.select %53, %49, %54 : vector<16x32xi1>, vector<16x32xf32>
    %56 = tpu.concatenate %24, %34, %41, %48, %55 in 1 : vector<16x32xf32>, vector<16x32xf32>, vector<16x32xf32>, vector<16x32xf32>, vector<16x32xf32> -> vector<16x160xf32>
    %57 = arith.truncf %56 : vector<16x160xf32> to vector<16x160xbf16>
    %cst_15 = arith.constant dense<0.000000e+00> : vector<16x48xf32>
    %58 = tpu.matmul %57, %1, %cst_15 {dimension_numbers = #tpu.dot_dimension_numbers<[1], [0], [0], [1], [0, 0, 1, 1], [], []>} : vector<16x160xbf16>, vector<160x48xbf16>, vector<16x48xf32> -> vector<16x48xf32>
    %59 = vector.broadcast %6 : vector<1x48xf32> to vector<16x48xf32>
    %60 = arith.addf %58, %59 : vector<16x48xf32>
    %cst_16 = arith.constant 0.000000e+00 : f32
    %61 = vector.broadcast %cst_16 : f32 to vector<16x48xf32>
    %62 = arith.maximumf %60, %61 : vector<16x48xf32>
    %63 = vector.shape_cast %62 : vector<16x48xf32> to vector<2x8x48xf32>
    %cst_17 = arith.constant dense<0xFF800000> : vector<2x48xf32>
    %64 = vector.multi_reduction <maximumf>, %63, %cst_17 [1] : vector<2x8x48xf32> to vector<2x48xf32>
    %65 = arith.truncf %64 : vector<2x48xf32> to vector<2x48xbf16>
    %cst_18 = arith.constant dense<0.000000e+00> : vector<2x34xf32>
    %66 = tpu.matmul %65, %2, %cst_18 {dimension_numbers = #tpu.dot_dimension_numbers<[1], [0], [0], [1], [0, 0, 1, 1], [], []>} : vector<2x48xbf16>, vector<48x34xbf16>, vector<2x34xf32> -> vector<2x34xf32>
    %67 = vector.broadcast %7 : vector<1x34xf32> to vector<2x34xf32>
    %68 = arith.addf %66, %67 : vector<2x34xf32>
    %cst_19 = arith.constant 0.000000e+00 : f32
    %69 = vector.broadcast %cst_19 : f32 to vector<2x94xf32>
    %70 = tpu.concatenate %68, %69 in 1 : vector<2x34xf32>, vector<2x94xf32> -> vector<2x128xf32>
    %cst_20 = arith.constant 0.000000e+00 : f32
    %71 = vector.broadcast %cst_20 : f32 to vector<6x128xf32>
    %72 = tpu.concatenate %70, %71 in 0 : vector<2x128xf32>, vector<6x128xf32> -> vector<8x128xf32>
    %c0_21 = arith.constant 0 : index
    %c0_22 = arith.constant 0 : index
    %73 = vector.load %arg2[%c0_21, %c0_22] : memref<8x128xf32, #tpu.memory_space<vmem>>, vector<8x128xf32>
    tpu.vector_store %arg2[%c0_21, %c0_22], %72 {strides = array<i32>} : memref<8x128xf32, #tpu.memory_space<vmem>>, vector<8x128xf32>,
    return
  }
}

</mosaic_0001>

<llo_original>
// kernel: encoder_forward.1
$region0: #{encoder_forward.1}
  #allocation0 [shape = 'u32[]', space=smem, size = 0x4, offset = 0x4, fixed_abs, tag = 'smem constant byte address 0x4 - core index']
  #allocation1 [shape = 'u32[144,128]{1,0:T(1,128)}', space=vmem, size = 0x12000, scoped, tag = 'internal scratch']
  %s0 = inlined_call_operand.vmem [shape: f32[16,2], index: 0, kind: input, shape index: {}]
  %s1 = inlined_call_operand.hbm [shape: bf16[288,128], index: 1, kind: input, shape index: {}]
  %s2 = inlined_call_operand.vmem [shape: f32[8,128], index: 2, kind: output, shape index: {}]
  %s3 = sld [smem:[#allocation0]]
  $region22: #{encoder_forward.1} parent=0
    _
  %s5 = ssub.s32 1, %s3
  %s6 = scalar_select 0, %s5, %s3
  $region1: #{encoder_forward.1} parent=0
    #allocation2 [shape = 'u8[73728]{0}', space=vmem, size = 0x12000, scoped, tag = 'input window, operand 1, single buffered']
    #allocation3 [shape = 's32[1]{0}', space=sflag, size = 0x4, scoped, tag = 'scoped memory for encoder_forward.1']
    %7 = vsyncpa [#allocation3], 0
    // Predicated region
    $region2: #{encoder_forward.1} parent=1 // pred_check
      _
    $region3: #{encoder_forward.1} parent=1 // pred_check_branch
      %9 = sbr.rel (0) target = $region5
    $region4: #{encoder_forward.1} parent=1 // pred_region
      _
    $region5: #{encoder_forward.1} parent=1 // pred_fallthru
      _
    // Predicated region
    $region6: #{encoder_forward.1} parent=1 // pred_check
      _
    $region7: #{encoder_forward.1} parent=1 // pred_check_branch
      %11 = sbr.rel (0) target = $region9
    $region8: #{encoder_forward.1} parent=1 // pred_region
      %s13 = ssub.s32 2304, 2304
      %14 = vsyncadd [#allocation3], %s13
      %s15 = sshll.u32 [#allocation2], 4
      %s16 = int_to_ptr.vmem [resolvable:$true] %s15
      %21 = dma.hbm_to_vmem [thread:$0]  %s1, 2304, %s16, [#allocation3], 64, 64, 4
    $region9: #{encoder_forward.1} parent=1 // pred_fallthru
      _
    // Predicated region
    $region10: #{encoder_forward.1} parent=1 // pred_check
      _
    $region11: #{encoder_forward.1} parent=1 // pred_check_branch
      %23 = sbr.rel (0) target = $region13
    $region12: #{encoder_forward.1} parent=1 // pred_region
      %24 = dma.done [#allocation3], 2304
    $region13: #{encoder_forward.1} parent=1 // pred_fallthru
      _
    %v26 = vld [vmem:[#allocation2] sm:$0xf]
    %v27 = vld [vmem:[#allocation2 + $0x4] sm:$0xf]
    %v28 = vld [vmem:[#allocation2 + $0x8] sm:$0xf]
    %v29 = vld [vmem:[#allocation2 + $0xc] sm:$0xf]
    %v30 = vld [vmem:[#allocation2 + $0x10] sm:$0xf]
    %v31 = vld [vmem:[#allocation2 + $0x14] sm:$0xf]
    %v32 = vld [vmem:[#allocation2 + $0x18] sm:$0xf]
    %v33 = vld [vmem:[#allocation2 + $0x1c] sm:$0xf]
    %v34 = vld [vmem:[#allocation2 + $0x20] sm:$0xf]
    %v35 = vld [vmem:[#allocation2 + $0x24] sm:$0xf]
    %v36 = vld [vmem:[#allocation2 + $0x28] sm:$0xf]
    %v37 = vld [vmem:[#allocation2 + $0x2c] sm:$0xf]
    %v38 = vld [vmem:[#allocation2 + $0x30] sm:$0xf]
    %v39 = vld [vmem:[#allocation2 + $0x34] sm:$0xf]
    %v40 = vld [vmem:[#allocation2 + $0x38] sm:$0xf]
    %v41 = vld [vmem:[#allocation2 + $0x3c] sm:$0xf]
    %v42 = vld [vmem:[#allocation2 + $0x40] sm:$0xf]
    %v43 = vld [vmem:[#allocation2 + $0x44] sm:$0xf]
    %v44 = vld [vmem:[#allocation2 + $0x48] sm:$0xf]
    %v45 = vld [vmem:[#allocation2 + $0x4c] sm:$0xf]
    %v46 = vld [vmem:[#allocation2 + $0x50] sm:$0xf]
    %v47 = vld [vmem:[#allocation2 + $0x54] sm:$0xf]
    %v48 = vld [vmem:[#allocation2 + $0x58] sm:$0xf]
    %v49 = vld [vmem:[#allocation2 + $0x5c] sm:$0xf]
    %v50 = vld [vmem:[#allocation2 + $0x60] sm:$0xf]
    %v51 = vld [vmem:[#allocation2 + $0x64] sm:$0xf]
    %v52 = vld [vmem:[#allocation2 + $0x68] sm:$0xf]
    %v53 = vld [vmem:[#allocation2 + $0x6c] sm:$0xf]
    %v54 = vld [vmem:[#allocation2 + $0x70] sm:$0xf]
    %v55 = vld [vmem:[#allocation2 + $0x74] sm:$0xf]
    %v56 = vld [vmem:[#allocation2 + $0x78] sm:$0xf]
    %v57 = vld [vmem:[#allocation2 + $0x7c] sm:$0xf]
    %v58 = vld [vmem:[#allocation2 + $0x80] sm:$0xf]
    %v59 = vld [vmem:[#allocation2 + $0x84] sm:$0xf]
    %v60 = vld [vmem:[#allocation2 + $0x88] sm:$0x1]
    %v61 = vunpack.c.l.bf16 %v60
    %v62 = vld [vmem:[%s0] sm:$0xff]
    %v63 = vld [vmem:[%s0 + $0x8] sm:$0xff]
    %v64 = vcvt.f32.s32.to.zero.pseudo %v62
    %v65 = vcvt.f32.s32.to.zero.pseudo %v63
    %v66 = vlaneseq
    %v67 = vand.u32 %v66, 127
    %68 = vset.pattern.permute.xlu0 0
    %69 = vperm.xlu0 %68, %v64
    %v70 = vpop.permute.xlu0 %69
    %71 = vset.pattern.permute.xlu0 0
    %72 = vperm.xlu0 %71, %v65
    %v73 = vpop.permute.xlu0 %72
    %vm74 = vcmp.eq.s32.totalorder %v67, %v70
    %vm75 = vcmp.eq.s32.totalorder %v67, %v73
    %v76 = vsel %vm74, 1, 0
    %v77 = vsel %vm75, 1, 0
    %v78 = vcvt.s32.f32 %v76
    %v79 = vcvt.s32.f32 %v77
    %v80 = vpack.c.bf16 %v79, %v78
    %v89 = vunpack.c.l.b16 %v26
    %v90 = vunpack.c.l.b16 %v27
    %v91 = vunpack.c.l.b16 %v28
    %v92 = vunpack.c.l.b16 %v29
    %v93 = vunpack.c.l.b16 %v30
    %v94 = vunpack.c.l.b16 %v31
    %v95 = vunpack.c.l.b16 %v32
    %v96 = vunpack.c.l.b16 %v33
    %v97 = vpack.c.b16 %v90, %v89
    %v98 = vpack.c.b16 %v92, %v91
    %v99 = vpack.c.b16 %v94, %v93
    %v100 = vpack.c.b16 %v96, %v95
    %vm105 = vcmask 523264
    %v107 = vsel %vm105, %v80, 0
    %109 = vmatprep.subr.bf16.mxu0 0
    %110 = vmatpush1.bf16.msra.mxu0 %v97
    %111 = vmatprep.subr.bf16.mxu0 0
    %112 = vmatpush1.bf16.msra.mxu0 %v98
    %113 = vmatprep.subr.bf16.mxu0 0
    %114 = vmatpush1.bf16.msra.mxu0 %v99
    %115 = vmatprep.subr.bf16.mxu0 0
    %116 = vmatpush1.bf16.msra.mxu0 %v100
    %117 = vmatprep.subr.bf16.mxu0 0
    %118 = vmatpush1.bf16.msra.mxu0 0
    %119 = vmatprep.subr.bf16.mxu0 0
    %120 = vmatpush1.bf16.msra.mxu0 0
    %121 = vmatprep.subr.bf16.mxu0 0
    %122 = vmatpush1.bf16.msra.mxu0 0
    %123 = vmatprep.subr.bf16.mxu0 0
    %124 = vmatpush1.bf16.msra.mxu0 0
    %125 = vmatprep.subr.bf16.mxu0 0
    %126 = vmatpush1.bf16.msra.mxu0 0
    %127 = vmatprep.subr.bf16.mxu0 0
    %128 = vmatpush1.bf16.msra.mxu0 0
    %129 = vmatprep.subr.bf16.mxu0 0
    %130 = vmatpush1.bf16.msra.mxu0 0
    %131 = vmatprep.subr.bf16.mxu0 0
    %132 = vmatpush1.bf16.msra.mxu0 0
    %133 = vmatprep.subr.bf16.mxu0 0
    %134 = vmatpush1.bf16.msra.mxu0 0
    %135 = vmatprep.subr.bf16.mxu0 0
    %136 = vmatpush1.bf16.msra.mxu0 0
    %137 = vmatprep.subr.bf16.mxu0 0
    %138 = vmatpush1.bf16.msra.mxu0 0
    %139 = vmatprep.subr.bf16.mxu0 0
    %140 = vmatpush1.bf16.msra.mxu0 0
    %141 = vmatprep.mubr.bf16.mxu0 0
    %142 = vmatmul.mubr.bf16.gmra.mrb[0].mxu0 %v107
    %v143 = vpop.f32.mrb[0].mxu0
    %v144 = vadd.f32 0.0, %v143
    %v145 = vpop.f32.mrb[0].mxu0
    %v146 = vpop.f32.mrb[0].mxu0
    %v147 = vadd.f32 0.0, %v146
    %v148 = vpop.f32.mrb[0].mxu0
    %149 = vdwg.mxu0
    %151 = vset.pattern.permute.xlu0 1
    %152 = vperm.xlu0 %151, %v62
    %v153 = vpop.permute.xlu0 %152
    %156 = vset.pattern.permute.xlu0 1
    %157 = vperm.xlu0 %156, %v63
    %v158 = vpop.permute.xlu0 %157
    %v160 = vmul.f32 %v144, %v153
    %v161 = vmul.f32 %v147, %v158
    %v162 = vlaneseq
    %v163 = vshrl.u32 %v162, 7
    %v164 = vsub.s32 0, %v163
    %v165 = vrot.slane %v61, %v164
    %v166 = vadd.f32 %v160, %v165
    %v167 = vadd.f32 %v161, %v165
    %v168 = vmax.f32 %v166, 0.0
    %v169 = vmax.f32 %v167, 0.0
    %v170 = vlaneseq
    %v171 = vshrl.u32 %v170, 7
    %v172 = vadd.s32 %v171, 8
    %v173 = vand.u32 %v171, 7
    %v174 = vand.u32 %v172, 7
    %v175 = vrot.slane %v168, 7
    %v176 = vrot.slane %v169, 7
    %vm177 = vcmp.lt.s32.totalorder %v171, 1
    %v178 = vsel %vm177, %v175, %v176
    %v179 = vsel %vm177, %v176, %v175
    %vm180 = vcmp.ge.s32.totalorder %v173, 1
    %vm181 = vcmp.ge.s32.totalorder %v174, 1
    %v182 = vsel %vm180, 1, 0
    %v183 = vsel %vm181, 1, 0
    %vm184 = vcmp.eq.s32.totalorder %v182, 1
    %vm185 = vcmp.eq.s32.totalorder %v183, 1
    %v186 = vsel %vm184, %v179, 0.0
    %v187 = vsel %vm185, %v178, 0.0
    %v188 = vrot.slane %v168, 6
    %v189 = vrot.slane %v169, 6
    %vm190 = vcmp.lt.s32.totalorder %v171, 2
    %v191 = vsel %vm190, %v188, %v189
    %v192 = vsel %vm190, %v189, %v188
    %vm193 = vcmp.ge.s32.totalorder %v173, 2
    %vm194 = vcmp.ge.s32.totalorder %v174, 2
    %v195 = vsel %vm193, 1, 0
    %v196 = vsel %vm194, 1, 0
    %vm197 = vcmp.eq.s32.totalorder %v195, 1
    %vm198 = vcmp.eq.s32.totalorder %v196, 1
    %v199 = vsel %vm197, %v192, 0.0
    %v200 = vsel %vm198, %v191, 0.0
    %v201 = vrot.slane %v168, 5
    %v202 = vrot.slane %v169, 5
    %vm203 = vcmp.lt.s32.totalorder %v171, 3
    %v204 = vsel %vm203, %v201, %v202
    %v205 = vsel %vm203, %v202, %v201
    %vm206 = vcmp.ge.s32.totalorder %v173, 3
    %vm207 = vcmp.ge.s32.totalorder %v174, 3
    %v208 = vsel %vm206, 1, 0
    %v209 = vsel %vm207, 1, 0
    %vm210 = vcmp.eq.s32.totalorder %v208, 1
    %vm211 = vcmp.eq.s32.totalorder %v209, 1
    %v212 = vsel %vm210, %v205, 0.0
    %v213 = vsel %vm211, %v204, 0.0
    %v214 = vrot.slane %v168, 4
    %v215 = vrot.slane %v169, 4
    %vm216 = vcmp.lt.s32.totalorder %v171, 4
    %v217 = vsel %vm216, %v214, %v215
    %v218 = vsel %vm216, %v215, %v214
    %vm219 = vcmp.ge.s32.totalorder %v173, 4
    %vm220 = vcmp.ge.s32.totalorder %v174, 4
    %v221 = vsel %vm219, 1, 0
    %v222 = vsel %vm220, 1, 0
    %vm223 = vcmp.eq.s32.totalorder %v221, 1
    %vm224 = vcmp.eq.s32.totalorder %v222, 1
    %v225 = vsel %vm223, %v218, 0.0
    %v226 = vsel %vm224, %v217, 0.0
    %229 = vrot.lane.b32.xlu0 %v186, 32
    %v230 = vpop.permute.xlu0 %229
    %231 = vrot.lane.b32.xlu0 %v187, 32
    %v232 = vpop.permute.xlu0 %231
    %237 = vrot.lane.b32.xlu0 %v199, 64
    %v238 = vpop.permute.xlu0 %237
    %239 = vrot.lane.b32.xlu0 %v200, 64
    %v240 = vpop.permute.xlu0 %239
    %245 = vrot.lane.b32.xlu0 %v212, 96
    %v246 = vpop.permute.xlu0 %245
    %247 = vrot.lane.b32.xlu0 %v213, 96
    %v248 = vpop.permute.xlu0 %247
    %vm251 = vcmask 261120
    %v252 = vsel %vm251, %v168, %v230
    %v253 = vsel %vm251, %v169, %v232
    %v254 = vsel %vm105, %v252, %v238
    %v255 = vsel %vm105, %v253, %v240
    %vm256 = vcmask 785408
    %v257 = vsel %vm256, %v254, %v246
    %v258 = vsel %vm256, %v255, %v248
    %v259 = vpack.c.bf16 %v258, %v257
    %v260 = vpack.c.bf16 %v226, %v225
    %v281 = vunpack.c.l.b16 %v34
    %v282 = vunpack.c.l.b16 %v35
    %v283 = vunpack.c.l.b16 %v36
    %v284 = vunpack.c.l.b16 %v37
    %v285 = vunpack.c.l.b16 %v38
    %v286 = vunpack.c.l.b16 %v39
    %v287 = vunpack.c.l.b16 %v40
    %v288 = vunpack.c.l.b16 %v41
    %v289 = vunpack.c.l.b16 %v42
    %v290 = vunpack.c.l.b16 %v43
    %v291 = vunpack.c.l.b16 %v44
    %v292 = vunpack.c.l.b16 %v45
    %v293 = vunpack.c.l.b16 %v46
    %v294 = vunpack.c.l.b16 %v47
    %v295 = vunpack.c.l.b16 %v48
    %v296 = vunpack.c.l.b16 %v49
    %v297 = vunpack.c.l.b16 %v50
    %v298 = vunpack.c.l.b16 %v51
    %v299 = vunpack.c.l.b16 %v52
    %v300 = vunpack.c.l.b16 %v53
    %v301 = vpack.c.b16 %v282, %v281
    %v302 = vpack.c.b16 %v284, %v283
    %v303 = vpack.c.b16 %v286, %v285
    %v304 = vpack.c.b16 %v288, %v287
    %v305 = vpack.c.b16 %v290, %v289
    %v306 = vpack.c.b16 %v292, %v291
    %v307 = vpack.c.b16 %v294, %v293
    %v308 = vpack.c.b16 %v296, %v295
    %v309 = vpack.c.b16 %v298, %v297
    %v310 = vpack.c.b16 %v300, %v299
    %322 = vrot.lane.b32.xlu0 %v165, 96
    %v323 = vpop.permute.xlu0 %322
    %v326 = vsel %vm251, %v260, 0
    %328 = vmatprep.subr.bf16.mxu0 0
    %329 = vmatpush1.bf16.msra.mxu0 %v301
    %330 = vmatprep.subr.bf16.mxu0 0
    %331 = vmatpush1.bf16.msra.mxu0 %v302
    %332 = vmatprep.subr.bf16.mxu0 0
    %333 = vmatpush1.bf16.msra.mxu0 %v303
    %334 = vmatprep.subr.bf16.mxu0 0
    %335 = vmatpush1.bf16.msra.mxu0 %v304
    %336 = vmatprep.subr.bf16.mxu0 0
    %337 = vmatpush1.bf16.msra.mxu0 %v305
    %338 = vmatprep.subr.bf16.mxu0 0
    %339 = vmatpush1.bf16.msra.mxu0 %v306
    %340 = vmatprep.subr.bf16.mxu0 0
    %341 = vmatpush1.bf16.msra.mxu0 %v307
    %342 = vmatprep.subr.bf16.mxu0 0
    %343 = vmatpush1.bf16.msra.mxu0 %v308
    %344 = vmatprep.subr.bf16.mxu0 0
    %345 = vmatpush1.bf16.msra.mxu0 %v309
    %346 = vmatprep.subr.bf16.mxu0 0
    %347 = vmatpush1.bf16.msra.mxu0 %v310
    %348 = vmatprep.subr.bf16.mxu0 0
    %349 = vmatpush1.bf16.msra.mxu0 0
    %350 = vmatprep.subr.bf16.mxu0 0
    %351 = vmatpush1.bf16.msra.mxu0 0
    %352 = vmatprep.subr.bf16.mxu0 0
    %353 = vmatpush1.bf16.msra.mxu0 0
    %354 = vmatprep.subr.bf16.mxu0 0
    %355 = vmatpush1.bf16.msra.mxu0 0
    %356 = vmatprep.subr.bf16.mxu0 0
    %357 = vmatpush1.bf16.msra.mxu0 0
    %358 = vmatprep.subr.bf16.mxu0 0
    %359 = vmatpush1.bf16.msra.mxu0 0
    %360 = vmatprep.mubr.bf16.mxu0 %v326
    %361 = vmatmul.mubr.bf16.gmra.mrb[0].mxu0 %v259
    %v362 = vpop.f32.mrb[0].mxu0
    %v363 = vadd.f32 %v323, %v362
    %v364 = vpop.f32.mrb[0].mxu0
    %v365 = vpop.f32.mrb[0].mxu0
    %v366 = vadd.f32 %v323, %v365
    %v367 = vpop.f32.mrb[0].mxu0
    %368 = vdwg.mxu0
    %v369 = vmax.f32 %v363, 0.0
    %v370 = vmax.f32 %v366, 0.0
    %vm371 = vcmask 392192
    %v372 = vsel %vm371, %v369, -inf
    %v373 = vrot.slane %v372, 4
    %v374 = vmax.f32 %v372, %v373
    %v375 = vrot.slane %v374, 2
    %v376 = vmax.f32 %v374, %v375
    %v377 = vrot.slane %v376, 1
    %v378 = vmax.f32 %v376, %v377
    %v379 = vsel %vm371, %v370, -inf
    %v380 = vrot.slane %v379, 4
    %v381 = vmax.f32 %v379, %v380
    %v382 = vrot.slane %v381, 2
    %v383 = vmax.f32 %v381, %v382
    %v384 = vrot.slane %v383, 1
    %v385 = vmax.f32 %v383, %v384
    %v386 = vpack.c.bf16 %v378, %v378
    %v387 = vpack.c.bf16 %v385, %v385
    %v390 = vunpack.c.l.b16 %v386
    %v391 = vunpack.c.l.b16 %v387
    %vm392 = vcmask 1041409
    %v393 = vsel %vm392, %v391, %v390
    %v394 = vpack.c.b16 %v393, %v393
    %v401 = vunpack.c.l.b16 %v54
    %v402 = vunpack.c.l.b16 %v55
    %v403 = vunpack.c.l.b16 %v56
    %v404 = vunpack.c.l.b16 %v57
    %v405 = vunpack.c.l.b16 %v58
    %v406 = vunpack.c.l.b16 %v59
    %v407 = vpack.c.b16 %v402, %v401
    %v408 = vpack.c.b16 %v404, %v403
    %v409 = vpack.c.b16 %v406, %v405
    %413 = vrot.lane.b32.xlu0 %v165, 48
    %v414 = vpop.permute.xlu0 %413
    %v417 = vsel %vm371, %v394, 0
    %419 = vmatprep.subr.bf16.mxu0 0
    %420 = vmatpush1.bf16.msra.mxu0 %v407
    %421 = vmatprep.subr.bf16.mxu0 0
    %422 = vmatpush1.bf16.msra.mxu0 %v408
    %423 = vmatprep.subr.bf16.mxu0 0
    %424 = vmatpush1.bf16.msra.mxu0 %v409
    %425 = vmatprep.subr.bf16.mxu0 0
    %426 = vmatpush1.bf16.msra.mxu0 0
    %427 = vmatprep.subr.bf16.mxu0 0
    %428 = vmatpush1.bf16.msra.mxu0 0
    %429 = vmatprep.subr.bf16.mxu0 0
    %430 = vmatpush1.bf16.msra.mxu0 0
    %431 = vmatprep.subr.bf16.mxu0 0
    %432 = vmatpush1.bf16.msra.mxu0 0
    %433 = vmatprep.subr.bf16.mxu0 0
    %434 = vmatpush1.bf16.msra.mxu0 0
    %435 = vmatprep.subr.bf16.mxu0 0
    %436 = vmatpush1.bf16.msra.mxu0 0
    %437 = vmatprep.subr.bf16.mxu0 0
    %438 = vmatpush1.bf16.msra.mxu0 0
    %439 = vmatprep.subr.bf16.mxu0 0
    %440 = vmatpush1.bf16.msra.mxu0 0
    %441 = vmatprep.subr.bf16.mxu0 0
    %442 = vmatpush1.bf16.msra.mxu0 0
    %443 = vmatprep.subr.bf16.mxu0 0
    %444 = vmatpush1.bf16.msra.mxu0 0
    %445 = vmatprep.subr.bf16.mxu0 0
    %446 = vmatpush1.bf16.msra.mxu0 0
    %447 = vmatprep.subr.bf16.mxu0 0
    %448 = vmatpush1.bf16.msra.mxu0 0
    %449 = vmatprep.subr.bf16.mxu0 0
    %450 = vmatpush1.bf16.msra.mxu0 0
    %451 = vmatprep.mubr.bf16.mxu0 0
    %452 = vmatmul.mubr.bf16.gmra.mrb[0].mxu0 %v417
    %v453 = vpop.f32.mrb[0].mxu0
    %v454 = vadd.f32 %v414, %v453
    %v455 = vpop.f32.mrb[0].mxu0
    %v456 = vpop.f32.mrb[0].mxu0
    %v457 = vpop.f32.mrb[0].mxu0
    %458 = vdwg.mxu0
    %vm459 = vcmask 277504
    %v460 = vsel %vm459, %v454, 0.0
    %vm461 = vcmask 1041408
    %v462 = vsel %vm461, %v460, 0.0
    %463 = vst [vmem:[%s2] sm:$0xff] %v462
    // Predicated region
    $region14: #{encoder_forward.1} parent=1 // pred_check
      _
    $region15: #{encoder_forward.1} parent=1 // pred_check_branch
      %465 = sbr.rel (0) target = $region17
    $region16: #{encoder_forward.1} parent=1 // pred_region
      _
    $region17: #{encoder_forward.1} parent=1 // pred_fallthru
      _
    // Predicated region
    $region18: #{encoder_forward.1} parent=1 // pred_check
      _
    $region19: #{encoder_forward.1} parent=1 // pred_check_branch
      %467 = sbr.rel (0) target = $region21
    $region20: #{encoder_forward.1} parent=1 // pred_region
      _
    $region21: #{encoder_forward.1} parent=1 // pred_fallthru
      _
    %468 = vsyncpa [#allocation3], 1

</llo_original>
